<compile_context>
chip_gen: v7x
topology: tpu7x:2x2x1
jax: 0.10.0
libtpu: 0.0.40
codegen_flags: <defaults>
</compile_context>

<pallas_src>
import functools
import math

import jax
import jax.numpy as jnp
from jax.experimental import pallas as pl
from jax.experimental.pallas import tpu as pltpu


def _softplus(x):
    # numerically stable softplus: max(x, 0) + log1p(exp(-|x|))
    return jnp.maximum(x, 0.0) + jnp.log1p(jnp.exp(-jnp.abs(x)))


def _bayes_linear_kernel(x_ref, wmu_ref, wrho_ref, weps_ref,
                         bmu_ref, brho_ref, beps_ref,
                         out_ref, kl_ref, acc_ref,
                         *, din, dout, tile_k, tile_n,
                         prior_mu, half_inv_prior_cov,
                         mask_rows, mask_cols):
    n = pl.program_id(0)          # output-dim tile index
    k = pl.program_id(1)          # input-dim (reduction) tile index
    nk = pl.num_programs(1)

    # ---- sample this weight tile from the variational posterior -------------
    w_std = _softplus(wrho_ref[...])
    w_std = jnp.maximum(w_std, jnp.float32(1e-30))          # guard log(0)
    w_sample = wmu_ref[...] + weps_ref[...] * w_std

    # bias std for this output tile (tiny (1, tile_n) block)
    b_std = _softplus(brho_ref[...])
    b_std = jnp.maximum(b_std, jnp.float32(1e-30))

    # ---- matmul: accumulate over the K grid axis in a VMEM scratch ----------
    @pl.when(k == 0)
    def _():
        acc_ref[...] = jnp.zeros_like(acc_ref)

    acc_ref[...] += jnp.dot(x_ref[...], w_sample,
                            preferred_element_type=jnp.float32)

    # ---- fused KL(q || prior) ------------------------------------------------
    # per element: 0.5/pc * (std^2 + (mu - pmu)^2) - log(std)
    # (constant 0.5 * N * (log(pc) - 1) is added in the wrapper)
    dw = wmu_ref[...] - prior_mu
    w_kl = half_inv_prior_cov * (w_std * w_std + dw * dw) - jnp.log(w_std)
    if mask_rows or mask_cols:
        row = k * tile_k + jax.lax.broadcasted_iota(jnp.int32, (tile_k, tile_n), 0)
        col = n * tile_n + jax.lax.broadcasted_iota(jnp.int32, (tile_k, tile_n), 1)
        w_kl = jnp.where((row < din) & (col < dout), w_kl, 0.0)
    tile_w_kl = jnp.sum(w_kl)

    @pl.when(k == 0)
    def _():
        # bias KL for the columns owned by this output tile (counted once per n)
        db = bmu_ref[...] - prior_mu
        b_kl = half_inv_prior_cov * (b_std * b_std + db * db) - jnp.log(b_std)
        if mask_cols:
            bcol = n * tile_n + jax.lax.broadcasted_iota(jnp.int32, (1, tile_n), 1)
            b_kl = jnp.where(bcol < dout, b_kl, 0.0)
        kl_ref[...] = jnp.reshape(jnp.sum(b_kl), (1, 1, 1))

    kl_ref[...] += jnp.reshape(tile_w_kl, (1, 1, 1))

    # ---- epilogue: sampled-bias add + lane-dense store on the last K step ---
    @pl.when(k == nk - 1)
    def _():
        b_sample = bmu_ref[...] + beps_ref[...] * b_std
        out_ref[...] = (acc_ref[...] + b_sample).astype(out_ref.dtype)


def _round_up(v, m):
    return ((v + m - 1) // m) * m


def _pick_tile(dim_padded, max_tile):
    """Largest multiple of 128 that is <= max_tile and divides dim_padded."""
    t = min(max_tile, dim_padded)
    while dim_padded % t:
        t -= 128
    return t


def bayes_linear_normalq_forward(x, weight_mus, weight_rhos, bias_mus, bias_rhos,
                                 weight_eps, bias_eps, prior_mu, prior_sigma,
                                 *, max_tile=512):
    """Forward pass of BayesLinear_Normalq (sample=True).

    Returns (output [B, Dout] f32, KL scalar f32).
    """
    B, Din = x.shape
    Dout = weight_mus.shape[1]
    f32 = jnp.float32

    # Padded, lane/sublane-friendly shapes and tile sizes (sized vs v7x VMEM).
    B_p = _round_up(B, 8)
    Din_p = _round_up(Din, 128)
    Dout_p = _round_up(Dout, 128)
    tile_k = _pick_tile(Din_p, max_tile)
    tile_n = _pick_tile(Dout_p, max_tile)
    k_tiles = Din_p // tile_k
    n_tiles = Dout_p // tile_n

    def pad2(a, rows, cols):
        a = a.astype(f32)
        return jnp.pad(a, ((0, rows - a.shape[0]), (0, cols - a.shape[1])))

    x_p = pad2(x, B_p, Din_p)
    wmu_p = pad2(weight_mus, Din_p, Dout_p)
    wrho_p = pad2(weight_rhos, Din_p, Dout_p)
    weps_p = pad2(weight_eps, Din_p, Dout_p)
    bmu_p = pad2(bias_mus.reshape(1, Dout), 1, Dout_p)
    brho_p = pad2(bias_rhos.reshape(1, Dout), 1, Dout_p)
    beps_p = pad2(bias_eps.reshape(1, Dout), 1, Dout_p)

    prior_cov = float(prior_sigma) ** 2
    kernel = functools.partial(
        _bayes_linear_kernel,
        din=Din, dout=Dout, tile_k=tile_k, tile_n=tile_n,
        prior_mu=float(prior_mu),
        half_inv_prior_cov=0.5 / prior_cov,
        mask_rows=(Din != Din_p), mask_cols=(Dout != Dout_p),
    )

    out_p, kl_parts = pl.pallas_call(
        kernel,
        out_shape=(
            jax.ShapeDtypeStruct((B_p, Dout_p), f32),
            jax.ShapeDtypeStruct((n_tiles, 1, 1), f32),
        ),
        grid_spec=pltpu.PrefetchScalarGridSpec(
            num_scalar_prefetch=0,
            grid=(n_tiles, k_tiles),
            in_specs=[
                pl.BlockSpec((B_p, tile_k), lambda n, k: (0, k)),      # x
                pl.BlockSpec((tile_k, tile_n), lambda n, k: (k, n)),   # weight_mu
                pl.BlockSpec((tile_k, tile_n), lambda n, k: (k, n)),   # weight_rho
                pl.BlockSpec((tile_k, tile_n), lambda n, k: (k, n)),   # weight_eps
                pl.BlockSpec((1, tile_n), lambda n, k: (0, n)),        # bias_mu
                pl.BlockSpec((1, tile_n), lambda n, k: (0, n)),        # bias_rho
                pl.BlockSpec((1, tile_n), lambda n, k: (0, n)),        # bias_eps
            ],
            out_specs=(
                pl.BlockSpec((B_p, tile_n), lambda n, k: (0, n)),      # output
                pl.BlockSpec((1, 1, 1), lambda n, k: (n, 0, 0)),       # KL partials
            ),
            scratch_shapes=[pltpu.VMEM((B_p, tile_n), jnp.float32)],   # matmul acc
        ),
        compiler_params=pltpu.CompilerParams(
            dimension_semantics=("parallel", "arbitrary"),
            vmem_limit_bytes=32 * 1024 * 1024,
        ),
    )(x_p, wmu_p, wrho_p, weps_p, bmu_p, brho_p, beps_p)

    # Constant KL terms: 0.5 * N * (log(prior_cov) - 1) for weights and biases.
    kl_const = 0.5 * (Din * Dout + Dout) * (math.log(prior_cov) - 1.0)
    kl = jnp.sum(kl_parts) + jnp.float32(kl_const)
    return out_p[:B, :Dout], kl


def _reference_forward(x, wmu, wrho, bmu, brho, weps, beps, pmu, psigma):
    """Pure-JAX reference mirroring the PyTorch module (sample=True)."""
    w_std = jnp.log1p(jnp.exp(wrho))
    b_std = jnp.log1p(jnp.exp(brho))
    w_s = wmu + weps * w_std
    b_s = bmu + beps * b_std
    # element-wise expanded matmul: no MXU precision ambiguity in the reference
    out = (x[:, :, None] * w_s[None, :, :]).sum(axis=1) + b_s
    pc = psigma ** 2
    kl = (0.5 * jnp.sum(jnp.log(pc / w_std ** 2)) - 0.5 * w_std.size
          + 0.5 * jnp.sum(w_std ** 2 / pc)
          + 0.5 * jnp.sum((wmu - pmu) ** 2 / pc)
          + 0.5 * jnp.sum(jnp.log(pc / b_std ** 2)) - 0.5 * b_std.size
          + 0.5 * jnp.sum(b_std ** 2 / pc)
          + 0.5 * jnp.sum((bmu - pmu) ** 2 / pc))
    return out, kl


def _run_case(seed, B, Din, Dout, prior_mu, prior_sigma, max_tile):
    key = jax.random.PRNGKey(seed)
    k_x, k_wmu, k_bmu, k_brho, k_weps, k_beps = jax.random.split(key, 6)

    # Parameter init mirroring the PyTorch __init__ (deterministic):
    weight_mus = jax.random.uniform(k_wmu, (Din, Dout), jnp.float32, -0.01, 0.01)
    weight_rhos = jnp.full((Din, Dout), -3.0, jnp.float32)      # uniform_(-3, -3)
    bias_mus = jax.random.uniform(k_bmu, (Dout,), jnp.float32, -0.01, 0.01)
    bias_rhos = jax.random.uniform(k_brho, (Dout,), jnp.float32, -4.0, -3.0)

    # Input and reparameterization noise:
    x = jax.random.normal(k_x, (B, Din), jnp.float32)
    weight_eps = jax.random.normal(k_weps, (Din, Dout), jnp.float32)
    bias_eps = jax.random.normal(k_beps, (Dout,), jnp.float32)

    out, kl = bayes_linear_normalq_forward(
        x, weight_mus, weight_rhos, bias_mus, bias_rhos,
        weight_eps, bias_eps, prior_mu, prior_sigma, max_tile=max_tile)
    jax.block_until_ready((out, kl))

    out_ref, kl_ref = _reference_forward(
        x, weight_mus, weight_rhos, bias_mus, bias_rhos,
        weight_eps, bias_eps, prior_mu, prior_sigma)

    assert out.shape == (B, Dout)
    assert jnp.allclose(out, out_ref, atol=2e-3, rtol=1e-3), \
        f"output mismatch (B={B}, Din={Din}, Dout={Dout})"
    assert jnp.allclose(kl, kl_ref, atol=1e-2, rtol=1e-4), \
        f"KL mismatch (B={B}, Din={Din}, Dout={Dout}): {kl} vs {kl_ref}"


if __name__ == "__main__":
    # Case 1: aligned shapes; max_tile=128 forces a (2, 2) grid so the K-axis
    # matmul accumulator and per-tile KL accumulation paths are exercised.
    _run_case(seed=0, B=8, Din=256, Dout=256, prior_mu=0.0, prior_sigma=0.1,
              max_tile=128)
    # Case 2: unaligned shapes exercising batch/lane padding + KL masking.
    _run_case(seed=1, B=5, Din=100, Dout=72, prior_mu=0.0, prior_sigma=0.1,
              max_tile=512)
    print("KERNEL_OK")
</pallas_src>

<mosaic_0001>
module attributes {stable_mosaic.version = 11 : i64} {
  func.func @_bayes_linear_kernel(%arg0: i32, %arg1: i32, %arg2: memref<8x128xf32, #tpu.memory_space<vmem>>, %arg3: memref<128x128xf32, #tpu.memory_space<vmem>>, %arg4: memref<128x128xf32, #tpu.memory_space<vmem>>, %arg5: memref<128x128xf32, #tpu.memory_space<vmem>>, %arg6: memref<1x128xf32, #tpu.memory_space<vmem>>, %arg7: memref<1x128xf32, #tpu.memory_space<vmem>>, %arg8: memref<1x128xf32, #tpu.memory_space<vmem>>, %arg9: memref<8x128xf32, #tpu.memory_space<vmem>>, %arg10: memref<1x1x1xf32, #tpu.memory_space<vmem>>, %arg11: memref<8x128xf32, #tpu.memory_space<vmem>>) attributes {dimension_semantics = [#tpu.dimension_semantics<parallel>, #tpu.dimension_semantics<arbitrary>], iteration_bounds = array<i64: 2, 2>, scalar_prefetch = 0 : i64, scratch_operands = 1 : i64, tpu.core_type = #tpu.core_type<tc>, window_params = [{transform_indices = @transform_0, window_bounds = array<i64: 8, 128>}, {transform_indices = @transform_1, window_bounds = array<i64: 128, 128>}, {transform_indices = @transform_2, window_bounds = array<i64: 128, 128>}, {transform_indices = @transform_3, window_bounds = array<i64: 128, 128>}, {transform_indices = @transform_4, window_bounds = array<i64: 1, 128>}, {transform_indices = @transform_5, window_bounds = array<i64: 1, 128>}, {transform_indices = @transform_6, window_bounds = array<i64: 1, 128>}, {transform_indices = @transform_7, window_bounds = array<i64: 8, 128>}, {transform_indices = @transform_8, window_bounds = array<i64: 1, 1, 1>}]} {
    %c0 = arith.constant 0 : index
    %c0_0 = arith.constant 0 : index
    %0 = vector.load %arg4[%c0, %c0_0] : memref<128x128xf32, #tpu.memory_space<vmem>>, vector<128x128xf32>
    %cst = arith.constant 0.000000e+00 : f32
    %1 = vector.broadcast %cst : f32 to vector<128x128xf32>
    %2 = arith.maximumf %0, %1 : vector<128x128xf32>
    %3 = math.absf %0 : vector<128x128xf32>
    %cst_1 = arith.constant 0.000000e+00 : f32
    %4 = vector.broadcast %cst_1 : f32 to vector<128x128xf32>
    %5 = arith.subf %4, %3 : vector<128x128xf32>
    %6 = math.exp %5 : vector<128x128xf32>
    %7 = math.log1p %6 : vector<128x128xf32>
    %8 = arith.addf %2, %7 : vector<128x128xf32>
    %cst_2 = arith.constant 1.000000e-30 : f32
    %9 = vector.broadcast %cst_2 : f32 to vector<128x128xf32>
    %10 = arith.maximumf %8, %9 : vector<128x128xf32>
    %c0_3 = arith.constant 0 : index
    %c0_4 = arith.constant 0 : index
    %11 = vector.load %arg3[%c0_3, %c0_4] : memref<128x128xf32, #tpu.memory_space<vmem>>, vector<128x128xf32>
    %c0_5 = arith.constant 0 : index
    %c0_6 = arith.constant 0 : index
    %12 = vector.load %arg5[%c0_5, %c0_6] : memref<128x128xf32, #tpu.memory_space<vmem>>, vector<128x128xf32>
    %13 = arith.mulf %12, %10 : vector<128x128xf32>
    %14 = arith.addf %11, %13 : vector<128x128xf32>
    %c0_7 = arith.constant 0 : index
    %c0_8 = arith.constant 0 : index
    %15 = vector.load %arg7[%c0_7, %c0_8] : memref<1x128xf32, #tpu.memory_space<vmem>>, vector<1x128xf32>
    %cst_9 = arith.constant 0.000000e+00 : f32
    %16 = vector.broadcast %cst_9 : f32 to vector<1x128xf32>
    %17 = arith.maximumf %15, %16 : vector<1x128xf32>
    %18 = math.absf %15 : vector<1x128xf32>
    %cst_10 = arith.constant 0.000000e+00 : f32
    %19 = vector.broadcast %cst_10 : f32 to vector<1x128xf32>
    %20 = arith.subf %19, %18 : vector<1x128xf32>
    %21 = math.exp %20 : vector<1x128xf32>
    %22 = math.log1p %21 : vector<1x128xf32>
    %23 = arith.addf %17, %22 : vector<1x128xf32>
    %cst_11 = arith.constant 1.000000e-30 : f32
    %24 = vector.broadcast %cst_11 : f32 to vector<1x128xf32>
    %25 = arith.maximumf %23, %24 : vector<1x128xf32>
    %c0_i32 = arith.constant 0 : i32
    %26 = arith.cmpi eq, %arg1, %c0_i32 : i32
    %27 = arith.extui %26 : i1 to i32
    %c0_i32_12 = arith.constant 0 : i32
    %28 = arith.cmpi ne, %27, %c0_i32_12 : i32
    scf.if %28 {
      %cst_34 = arith.constant 0.000000e+00 : f32
      %58 = vector.broadcast %cst_34 : f32 to vector<8x128xf32>
      %c0_35 = arith.constant 0 : index
      %c0_36 = arith.constant 0 : index
      %59 = vector.load %arg11[%c0_35, %c0_36] : memref<8x128xf32, #tpu.memory_space<vmem>>, vector<8x128xf32>
      tpu.vector_store %arg11[%c0_35, %c0_36], %58 {strides = array<i32>} : memref<8x128xf32, #tpu.memory_space<vmem>>, vector<8x128xf32>,
    } else {
    }
    %c0_13 = arith.constant 0 : index
    %c0_14 = arith.constant 0 : index
    %29 = vector.load %arg11[%c0_13, %c0_14] : memref<8x128xf32, #tpu.memory_space<vmem>>, vector<8x128xf32>
    %c0_15 = arith.constant 0 : index
    %c0_16 = arith.constant 0 : index
    %30 = vector.load %arg2[%c0_15, %c0_16] : memref<8x128xf32, #tpu.memory_space<vmem>>, vector<8x128xf32>
    %cst_17 = arith.constant dense<0.000000e+00> : vector<8x128xf32>
    %31 = tpu.matmul %30, %14, %cst_17 {dimension_numbers = #tpu.dot_dimension_numbers<[1], [0], [0], [1], [0, 0, 1, 1], [], []>} : vector<8x128xf32>, vector<128x128xf32>, vector<8x128xf32> -> vector<8x128xf32>
    %32 = arith.addf %29, %31 : vector<8x128xf32>
    %c0_18 = arith.constant 0 : index
    %c0_19 = arith.constant 0 : index
    %33 = vector.load %arg11[%c0_18, %c0_19] : memref<8x128xf32, #tpu.memory_space<vmem>>, vector<8x128xf32>
    tpu.vector_store %arg11[%c0_18, %c0_19], %32 {strides = array<i32>} : memref<8x128xf32, #tpu.memory_space<vmem>>, vector<8x128xf32>,
    %c0_20 = arith.constant 0 : index
    %c0_21 = arith.constant 0 : index
    %34 = vector.load %arg3[%c0_20, %c0_21] : memref<128x128xf32, #tpu.memory_space<vmem>>, vector<128x128xf32>
    %cst_22 = arith.constant 0.000000e+00 : f32
    %35 = vector.broadcast %cst_22 : f32 to vector<128x128xf32>
    %36 = arith.subf %34, %35 : vector<128x128xf32>
    %37 = arith.mulf %10, %10 : vector<128x128xf32>
    %38 = arith.mulf %36, %36 : vector<128x128xf32>
    %39 = arith.addf %37, %38 : vector<128x128xf32>
    %cst_23 = arith.constant 5.000000e+01 : f32
    %40 = vector.broadcast %cst_23 : f32 to vector<128x128xf32>
    %41 = arith.mulf %40, %39 : vector<128x128xf32>
    %42 = math.log %10 : vector<128x128xf32>
    %43 = arith.subf %41, %42 : vector<128x128xf32>
    %44 = vector.shape_cast %43 : vector<128x128xf32> to vector<1x128x128xf32>
    %cst_24 = arith.constant dense<0.000000e+00> : vector<1xf32>
    %45 = vector.multi_reduction <add>, %44, %cst_24 [1, 2] : vector<1x128x128xf32> to vector<1xf32>
    %46 = vector.shape_cast %45 : vector<1xf32> to vector<1x1x1xf32>
    %47 = vector.extract %46[0, 0, 0] : f32 from vector<1x1x1xf32>
    %c0_i32_25 = arith.constant 0 : i32
    %48 = arith.cmpi eq, %arg1, %c0_i32_25 : i32
    %49 = arith.extui %48 : i1 to i32
    %c0_i32_26 = arith.constant 0 : i32
    %50 = arith.cmpi ne, %49, %c0_i32_26 : i32
    scf.if %50 {
      %c0_34 = arith.constant 0 : index
      %c0_35 = arith.constant 0 : index
      %58 = vector.load %arg6[%c0_34, %c0_35] : memref<1x128xf32, #tpu.memory_space<vmem>>, vector<1x128xf32>
      %cst_36 = arith.constant 0.000000e+00 : f32
      %59 = vector.broadcast %cst_36 : f32 to vector<1x128xf32>
      %60 = arith.subf %58, %59 : vector<1x128xf32>
      %61 = arith.mulf %25, %25 : vector<1x128xf32>
      %62 = arith.mulf %60, %60 : vector<1x128xf32>
      %63 = arith.addf %61, %62 : vector<1x128xf32>
      %cst_37 = arith.constant 5.000000e+01 : f32
      %64 = vector.broadcast %cst_37 : f32 to vector<1x128xf32>
      %65 = arith.mulf %64, %63 : vector<1x128xf32>
      %66 = math.log %25 : vector<1x128xf32>
      %67 = arith.subf %65, %66 : vector<1x128xf32>
      %68 = vector.shape_cast %67 : vector<1x128xf32> to vector<1x1x128xf32>
      %cst_38 = arith.constant dense<0.000000e+00> : vector<1xf32>
      %69 = vector.multi_reduction <add>, %68, %cst_38 [1, 2] : vector<1x1x128xf32> to vector<1xf32>
      %70 = vector.shape_cast %69 : vector<1xf32> to vector<1x1x1xf32>
      %71 = vector.extract %70[0, 0, 0] : f32 from vector<1x1x1xf32>
      %72 = vector.broadcast %71 : f32 to vector<1x1x1xf32>
      %c0_39 = arith.constant 0 : index
      %c0_40 = arith.constant 0 : index
      %c0_41 = arith.constant 0 : index
      %73 = vector.load %arg10[%c0_39, %c0_40, %c0_41] : memref<1x1x1xf32, #tpu.memory_space<vmem>>, vector<1x1x1xf32>
      tpu.vector_store %arg10[%c0_39, %c0_40, %c0_41], %72 {strides = array<i32>} : memref<1x1x1xf32, #tpu.memory_space<vmem>>, vector<1x1x1xf32>,
    } else {
    }
    %c0_27 = arith.constant 0 : index
    %c0_28 = arith.constant 0 : index
    %c0_29 = arith.constant 0 : index
    %51 = vector.load %arg10[%c0_27, %c0_28, %c0_29] : memref<1x1x1xf32, #tpu.memory_space<vmem>>, vector<1x1x1xf32>
    %52 = vector.broadcast %47 : f32 to vector<1x1x1xf32>
    %53 = arith.addf %51, %52 : vector<1x1x1xf32>
    %c0_30 = arith.constant 0 : index
    %c0_31 = arith.constant 0 : index
    %c0_32 = arith.constant 0 : index
    %54 = vector.load %arg10[%c0_30, %c0_31, %c0_32] : memref<1x1x1xf32, #tpu.memory_space<vmem>>, vector<1x1x1xf32>
    tpu.vector_store %arg10[%c0_30, %c0_31, %c0_32], %53 {strides = array<i32>} : memref<1x1x1xf32, #tpu.memory_space<vmem>>, vector<1x1x1xf32>,
    %c1_i32 = arith.constant 1 : i32
    %55 = arith.cmpi eq, %arg1, %c1_i32 : i32
    %56 = arith.extui %55 : i1 to i32
    %c0_i32_33 = arith.constant 0 : i32
    %57 = arith.cmpi ne, %56, %c0_i32_33 : i32
    scf.if %57 {
      %c0_34 = arith.constant 0 : index
      %c0_35 = arith.constant 0 : index
      %58 = vector.load %arg6[%c0_34, %c0_35] : memref<1x128xf32, #tpu.memory_space<vmem>>, vector<1x128xf32>
      %c0_36 = arith.constant 0 : index
      %c0_37 = arith.constant 0 : index
      %59 = vector.load %arg8[%c0_36, %c0_37] : memref<1x128xf32, #tpu.memory_space<vmem>>, vector<1x128xf32>
      %60 = arith.mulf %59, %25 : vector<1x128xf32>
      %61 = arith.addf %58, %60 : vector<1x128xf32>
      %c0_38 = arith.constant 0 : index
      %c0_39 = arith.constant 0 : index
      %62 = vector.load %arg11[%c0_38, %c0_39] : memref<8x128xf32, #tpu.memory_space<vmem>>, vector<8x128xf32>
      %63 = vector.broadcast %61 : vector<1x128xf32> to vector<8x128xf32>
      %64 = arith.addf %62, %63 : vector<8x128xf32>
      %c0_40 = arith.constant 0 : index
      %c0_41 = arith.constant 0 : index
      %65 = vector.load %arg9[%c0_40, %c0_41] : memref<8x128xf32, #tpu.memory_space<vmem>>, vector<8x128xf32>
      tpu.vector_store %arg9[%c0_40, %c0_41], %64 {strides = array<i32>} : memref<8x128xf32, #tpu.memory_space<vmem>>, vector<8x128xf32>,
    } else {
    }
    return
  }
  func.func @transform_0(%arg0: i32, %arg1: i32) -> (i32, i32) {
    %c0_i32 = arith.constant 0 : i32
    %c0_i32_0 = arith.constant 0 : i32
    return %c0_i32, %arg1 : i32, i32
  }
  func.func @transform_1(%arg0: i32, %arg1: i32) -> (i32, i32) {
    %c0_i32 = arith.constant 0 : i32
    return %arg1, %arg0 : i32, i32
  }
  func.func @transform_2(%arg0: i32, %arg1: i32) -> (i32, i32) {
    %c0_i32 = arith.constant 0 : i32
    return %arg1, %arg0 : i32, i32
  }
  func.func @transform_3(%arg0: i32, %arg1: i32) -> (i32, i32) {
    %c0_i32 = arith.constant 0 : i32
    return %arg1, %arg0 : i32, i32
  }
  func.func @transform_4(%arg0: i32, %arg1: i32) -> (i32, i32) {
    %c0_i32 = arith.constant 0 : i32
    %c0_i32_0 = arith.constant 0 : i32
    return %c0_i32, %arg0 : i32, i32
  }
  func.func @transform_5(%arg0: i32, %arg1: i32) -> (i32, i32) {
    %c0_i32 = arith.constant 0 : i32
    %c0_i32_0 = arith.constant 0 : i32
    return %c0_i32, %arg0 : i32, i32
  }
  func.func @transform_6(%arg0: i32, %arg1: i32) -> (i32, i32) {
    %c0_i32 = arith.constant 0 : i32
    %c0_i32_0 = arith.constant 0 : i32
    return %c0_i32, %arg0 : i32, i32
  }
  func.func @transform_7(%arg0: i32, %arg1: i32) -> (i32, i32) {
    %c0_i32 = arith.constant 0 : i32
    %c0_i32_0 = arith.constant 0 : i32
    return %c0_i32, %arg0 : i32, i32
  }
  func.func @transform_8(%arg0: i32, %arg1: i32) -> (i32, i32, i32) {
    %c0_i32 = arith.constant 0 : i32
    %c0_i32_0 = arith.constant 0 : i32
    %c0_i32_1 = arith.constant 0 : i32
    return %arg0, %c0_i32, %c0_i32_0 : i32, i32, i32
  }
}

</mosaic_0001>

<llo_original>
// kernel: tpu_custom_call.1
$region0: #{tpu_custom_call.1}
  #allocation0 [shape = 'u32[]', space=smem, size = 0x4, offset = 0x4, fixed_abs, tag = 'smem constant byte address 0x4 - core index']
  #allocation1 [shape = 'u32[144,128]{1,0:T(1,128)}', space=vmem, size = 0x12000, scoped, tag = 'internal scratch']
  #allocation2 [shape = 'f32[8,128]{1,0:T(8,128)}', space=vmem, size = 0x1000, scoped, tag = 'scratch operand']
  %s0 = inlined_call_operand.hbm [shape: f32[8,256], index: 0, kind: input, shape index: {}]
  %s1 = inlined_call_operand.hbm [shape: f32[256,256], index: 1, kind: input, shape index: {}]
  %s2 = inlined_call_operand.hbm [shape: f32[256,256], index: 2, kind: input, shape index: {}]
  %s3 = inlined_call_operand.hbm [shape: f32[256,256], index: 3, kind: input, shape index: {}]
  %s4 = inlined_call_operand.vmem [shape: f32[1,256], index: 4, kind: input, shape index: {}]
  %s5 = inlined_call_operand.vmem [shape: f32[1,256], index: 5, kind: input, shape index: {}]
  %s6 = inlined_call_operand.vmem [shape: f32[1,256], index: 6, kind: input, shape index: {}]
  %s7 = inlined_call_operand.hbm [shape: f32[8,256], index: 7, kind: output, shape index: {0}]
  %s8 = inlined_call_operand.vmem [shape: f32[2,1,1], index: 8, kind: output, shape index: {1}]
  %9 = xla_tuple %s7, %s8
  %s10 = sld [smem:[#allocation0]]
  $region97: #{tpu_custom_call.1} parent=0
    _
  %s12 = ssub.s32 1, %s10
  %s13 = scalar_select 0, %s12, %s10
  $region1: #{tpu_custom_call.1} parent=0
    #allocation3 [shape = 'u8[8192]{0}', space=vmem, size = 0x2000, scoped, tag = 'input window, operand 0']
    #allocation4 [shape = 's32[2]{0}', space=sflag, size = 0x8, scoped, tag = 'scoped memory for tpu_custom_call.1']
    #allocation5 [shape = 's32[2]{0}', space=sflag, size = 0x8, scoped, tag = 'scoped memory for tpu_custom_call.1']
    #allocation6 [shape = 'u8[131072]{0}', space=vmem, size = 0x20000, scoped, tag = 'input window, operand 1']
    #allocation7 [shape = 's32[2]{0}', space=sflag, size = 0x8, scoped, tag = 'scoped memory for tpu_custom_call.1']
    #allocation8 [shape = 'u8[131072]{0}', space=vmem, size = 0x20000, scoped, tag = 'input window, operand 2']
    #allocation9 [shape = 'u8[131072]{0}', space=vmem, size = 0x20000, scoped, tag = 'input window, operand 3']
    #allocation10 [shape = 's32[2]{0}', space=sflag, size = 0x8, scoped, tag = 'scoped memory for tpu_custom_call.1']
    #allocation11 [shape = 'u8[8192]{0}', space=vmem, size = 0x2000, scoped, tag = 'output window, operand 0']
    %14 = vsyncpa [#allocation4], 0
    %s15 = scalar_lea.sflag [#allocation4], 1
    %16 = vsyncpa %s15, 0
    %17 = vsyncpa [#allocation7], 0
    %s18 = scalar_lea.sflag [#allocation7], 1
    %19 = vsyncpa %s18, 0
    %20 = vsyncpa [#allocation10], 0
    %s21 = scalar_lea.sflag [#allocation10], 1
    %22 = vsyncpa %s21, 0
    %23 = vsyncpa [#allocation5], 0
    %s24 = scalar_lea.sflag [#allocation5], 1
    %25 = vsyncpa %s24, 0
    loop: start=0, step=1, limit=6
    $region2: #{tpu_custom_call.1} parent=1 // loop_pre_header
      _
    $region3: #{tpu_custom_call.1} parent=1 // loop_header
      %s27 = sphi 0, %s31
      %p28 = scmp.ge.s32.totalorder %s27, 6
      %s34 = sphi 0, %s46
      %s35 = sphi 0, %s42
      %s36 = sphi 0, %s34
      %s37 = sphi 0, %s35
      %s38 = sphi 0, %s36
      %s39 = sphi 0, %s37
      %s49 = sphi 0, %s51
      %s52 = sphi 0, %s49
      %s53 = sphi 0, %s52
      %s69 = sphi 0, %s53
      %s77 = sphi 0, %s79
      %s80 = sphi 0, %s77
      %s81 = sphi 0, %s80
      %s97 = sphi 0, %s81
      %s105 = sphi 0, %s107
      %s108 = sphi 0, %s105
      %s109 = sphi 0, %s108
      %s125 = sphi 0, %s109
      %s133 = sphi 0, %s135
      %s136 = sphi 0, %s133
      %s137 = sphi 0, %s136
      %s153 = sphi 0, %s137
      %s159 = sphi 0, %s161
      %s162 = sphi 0, %s159
      %s163 = sphi 0, %s162
      %s179 = sphi 0, %s163
      %s185 = sphi 0, %s187
      %s188 = sphi 0, %s185
      %s189 = sphi 0, %s188
      %s205 = sphi 0, %s189
      %s211 = sphi 0, %s213
      %s214 = sphi 0, %s211
      %s215 = sphi 0, %s214
      %s231 = sphi 0, %s215
      %s237 = sphi 0, %s239
      %s240 = sphi 0, %s237
      %s241 = sphi 0, %s240
      %s257 = sphi 0, %s241
      %s263 = sphi 0, %s265
      %s266 = sphi 0, %s263
      %s267 = sphi 0, %s266
      %s283 = sphi 0, %s267
    $region4: #{tpu_custom_call.1} parent=1 // loop_header_branch
      %30 = sbr.rel (%p28) target = $region8
    $region5: #{tpu_custom_call.1} parent=1 // loop_body
      %s32 = ssub.s32 %s27, 1
      %s33 = ssub.s32 %s27, 2
      %s40 = sadd.s32 1, %s35
      %p41 = scmp.ge.s32.totalorder %s40, 2
      %s42 = scalar_select %p41, 0, %s40
      %s43 = sadd.s32 1, %s34
      %s44 = scalar_select %p41, %s43, %s34
      %p45 = scmp.ge.s32.totalorder %s44, 2
      %s46 = scalar_select %p45, 0, %s44
      %s47 = ssub.s32 %s35, %s42
      %p48 = scmp.eq.s32.totalorder %s47, 0
      %s50 = sadd.s32 %s49, 1
      %s51 = scalar_select %p48, %s49, %s50
      %p54 = pneg %p48
      %p55 = scmp.eq.s32.totalorder %s27, 3
      %p56 = por %p54, %p55
      %p57 = scmp.ne.s32.totalorder %s49, %s52
      %p58 = scmp.eq.s32.totalorder %s27, 0
      %p59 = por %p57, %p58
      %p60 = scmp.ne.s32.totalorder %s49, %s52
      %p61 = scmp.eq.s32.totalorder %s32, 3
      %p62 = por %p60, %p61
      %p63 = scmp.ne.s32.totalorder %s52, %s53
      %p64 = scmp.eq.s32.totalorder %s32, 0
      %p65 = por %p63, %p64
      %p66 = scmp.ne.s32.totalorder %s52, %s53
      %p67 = scmp.eq.s32.totalorder %s33, 3
      %p68 = por %p66, %p67
      %p70 = scmp.ne.s32.totalorder %s53, %s69
      %p71 = scmp.eq.s32.totalorder %s33, 0
      %p72 = por %p70, %p71
      %s73 = ssub.s32 %s35, %s42
      %s74 = ssub.s32 %s34, %s46
      %s75 = sor.u32 %s73, %s74
      %p76 = scmp.eq.s32.totalorder %s75, 0
      %s78 = sadd.s32 %s77, 1
      %s79 = scalar_select %p76, %s77, %s78
      %p82 = pneg %p76
      %p83 = scmp.eq.s32.totalorder %s27, 3
      %p84 = por %p82, %p83
      %p85 = scmp.ne.s32.totalorder %s77, %s80
      %p86 = scmp.eq.s32.totalorder %s27, 0
      %p87 = por %p85, %p86
      %p88 = scmp.ne.s32.totalorder %s77, %s80
      %p89 = scmp.eq.s32.totalorder %s32, 3
      %p90 = por %p88, %p89
      %p91 = scmp.ne.s32.totalorder %s80, %s81
      %p92 = scmp.eq.s32.totalorder %s32, 0
      %p93 = por %p91, %p92
      %p94 = scmp.ne.s32.totalorder %s80, %s81
      %p95 = scmp.eq.s32.totalorder %s33, 3
      %p96 = por %p94, %p95
      %p98 = scmp.ne.s32.totalorder %s81, %s97
      %p99 = scmp.eq.s32.totalorder %s33, 0
      %p100 = por %p98, %p99
      %s101 = ssub.s32 %s35, %s42
      %s102 = ssub.s32 %s34, %s46
      %s103 = sor.u32 %s101, %s102
      %p104 = scmp.eq.s32.totalorder %s103, 0
      %s106 = sadd.s32 %s105, 1
      %s107 = scalar_select %p104, %s105, %s106
      %p110 = pneg %p104
      %p111 = scmp.eq.s32.totalorder %s27, 3
      %p112 = por %p110, %p111
      %p113 = scmp.ne.s32.totalorder %s105, %s108
      %p114 = scmp.eq.s32.totalorder %s27, 0
      %p115 = por %p113, %p114
      %p116 = scmp.ne.s32.totalorder %s105, %s108
      %p117 = scmp.eq.s32.totalorder %s32, 3
      %p118 = por %p116, %p117
      %p119 = scmp.ne.s32.totalorder %s108, %s109
      %p120 = scmp.eq.s32.totalorder %s32, 0
      %p121 = por %p119, %p120
      %p122 = scmp.ne.s32.totalorder %s108, %s109
      %p123 = scmp.eq.s32.totalorder %s33, 3
      %p124 = por %p122, %p123
      %p126 = scmp.ne.s32.totalorder %s109, %s125
      %p127 = scmp.eq.s32.totalorder %s33, 0
      %p128 = por %p126, %p127
      %s129 = ssub.s32 %s35, %s42
      %s130 = ssub.s32 %s34, %s46
      %s131 = sor.u32 %s129, %s130
      %p132 = scmp.eq.s32.totalorder %s131, 0
      %s134 = sadd.s32 %s133, 1
      %s135 = scalar_select %p132, %s133, %s134
      %p138 = pneg %p132
      %p139 = scmp.eq.s32.totalorder %s27, 3
      %p140 = por %p138, %p139
      %p141 = scmp.ne.s32.totalorder %s133, %s136
      %p142 = scmp.eq.s32.totalorder %s27, 0
      %p143 = por %p141, %p142
      %p144 = scmp.ne.s32.totalorder %s133, %s136
      %p145 = scmp.eq.s32.totalorder %s32, 3
      %p146 = por %p144, %p145
      %p147 = scmp.ne.s32.totalorder %s136, %s137
      %p148 = scmp.eq.s32.totalorder %s32, 0
      %p149 = por %p147, %p148
      %p150 = scmp.ne.s32.totalorder %s136, %s137
      %p151 = scmp.eq.s32.totalorder %s33, 3
      %p152 = por %p150, %p151
      %p154 = scmp.ne.s32.totalorder %s137, %s153
      %p155 = scmp.eq.s32.totalorder %s33, 0
      %p156 = por %p154, %p155
      %s157 = ssub.s32 %s34, %s46
      %p158 = scmp.eq.s32.totalorder %s157, 0
      %s160 = sadd.s32 %s159, 1
      %s161 = scalar_select %p158, %s159, %s160
      %p164 = pneg %p158
      %p165 = scmp.eq.s32.totalorder %s27, 3
      %p166 = por %p164, %p165
      %p167 = scmp.ne.s32.totalorder %s159, %s162
      %p168 = scmp.eq.s32.totalorder %s27, 0
      %p169 = por %p167, %p168
      %p170 = scmp.ne.s32.totalorder %s159, %s162
      %p171 = scmp.eq.s32.totalorder %s32, 3
      %p172 = por %p170, %p171
      %p173 = scmp.ne.s32.totalorder %s162, %s163
      %p174 = scmp.eq.s32.totalorder %s32, 0
      %p175 = por %p173, %p174
      %p176 = scmp.ne.s32.totalorder %s162, %s163
      %p177 = scmp.eq.s32.totalorder %s33, 3
      %p178 = por %p176, %p177
      %p180 = scmp.ne.s32.totalorder %s163, %s179
      %p181 = scmp.eq.s32.totalorder %s33, 0
      %p182 = por %p180, %p181
      %s183 = ssub.s32 %s34, %s46
      %p184 = scmp.eq.s32.totalorder %s183, 0
      %s186 = sadd.s32 %s185, 1
      %s187 = scalar_select %p184, %s185, %s186
      %p190 = pneg %p184
      %p191 = scmp.eq.s32.totalorder %s27, 3
      %p192 = por %p190, %p191
      %p193 = scmp.ne.s32.totalorder %s185, %s188
      %p194 = scmp.eq.s32.totalorder %s27, 0
      %p195 = por %p193, %p194
      %p196 = scmp.ne.s32.totalorder %s185, %s188
      %p197 = scmp.eq.s32.totalorder %s32, 3
      %p198 = por %p196, %p197
      %p199 = scmp.ne.s32.totalorder %s188, %s189
      %p200 = scmp.eq.s32.totalorder %s32, 0
      %p201 = por %p199, %p200
      %p202 = scmp.ne.s32.totalorder %s188, %s189
      %p203 = scmp.eq.s32.totalorder %s33, 3
      %p204 = por %p202, %p203
      %p206 = scmp.ne.s32.totalorder %s189, %s205
      %p207 = scmp.eq.s32.totalorder %s33, 0
      %p208 = por %p206, %p207
      %s209 = ssub.s32 %s34, %s46
      %p210 = scmp.eq.s32.totalorder %s209, 0
      %s212 = sadd.s32 %s211, 1
      %s213 = scalar_select %p210, %s211, %s212
      %p216 = pneg %p210
      %p217 = scmp.eq.s32.totalorder %s27, 3
      %p218 = por %p216, %p217
      %p219 = scmp.ne.s32.totalorder %s211, %s214
      %p220 = scmp.eq.s32.totalorder %s27, 0
      %p221 = por %p219, %p220
      %p222 = scmp.ne.s32.totalorder %s211, %s214
      %p223 = scmp.eq.s32.totalorder %s32, 3
      %p224 = por %p222, %p223
      %p225 = scmp.ne.s32.totalorder %s214, %s215
      %p226 = scmp.eq.s32.totalorder %s32, 0
      %p227 = por %p225, %p226
      %p228 = scmp.ne.s32.totalorder %s214, %s215
      %p229 = scmp.eq.s32.totalorder %s33, 3
      %p230 = por %p228, %p229
      %p232 = scmp.ne.s32.totalorder %s215, %s231
      %p233 = scmp.eq.s32.totalorder %s33, 0
      %p234 = por %p232, %p233
      %s235 = ssub.s32 %s34, %s46
      %p236 = scmp.eq.s32.totalorder %s235, 0
      %s238 = sadd.s32 %s237, 1
      %s239 = scalar_select %p236, %s237, %s238
      %p242 = pneg %p236
      %p243 = scmp.eq.s32.totalorder %s27, 3
      %p244 = por %p242, %p243
      %p245 = scmp.ne.s32.totalorder %s237, %s240
      %p246 = scmp.eq.s32.totalorder %s27, 0
      %p247 = por %p245, %p246
      %p248 = scmp.ne.s32.totalorder %s237, %s240
      %p249 = scmp.eq.s32.totalorder %s32, 3
      %p250 = por %p248, %p249
      %p251 = scmp.ne.s32.totalorder %s240, %s241
      %p252 = scmp.eq.s32.totalorder %s32, 0
      %p253 = por %p251, %p252
      %p254 = scmp.ne.s32.totalorder %s240, %s241
      %p255 = scmp.eq.s32.totalorder %s33, 3
      %p256 = por %p254, %p255
      %p258 = scmp.ne.s32.totalorder %s241, %s257
      %p259 = scmp.eq.s32.totalorder %s33, 0
      %p260 = por %p258, %p259
      %s261 = ssub.s32 %s34, %s46
      %p262 = scmp.eq.s32.totalorder %s261, 0
      %s264 = sadd.s32 %s263, 1
      %s265 = scalar_select %p262, %s263, %s264
      %p268 = pneg %p262
      %p269 = scmp.eq.s32.totalorder %s27, 3
      %p270 = por %p268, %p269
      %p271 = scmp.ne.s32.totalorder %s263, %s266
      %p272 = scmp.eq.s32.totalorder %s27, 0
      %p273 = por %p271, %p272
      %p274 = scmp.ne.s32.totalorder %s263, %s266
      %p275 = scmp.eq.s32.totalorder %s32, 3
      %p276 = por %p274, %p275
      %p277 = scmp.ne.s32.totalorder %s266, %s267
      %p278 = scmp.eq.s32.totalorder %s32, 0
      %p279 = por %p277, %p278
      %p280 = scmp.ne.s32.totalorder %s266, %s267
      %p281 = scmp.eq.s32.totalorder %s33, 3
      %p282 = por %p280, %p281
      %p284 = scmp.ne.s32.totalorder %s267, %s283
      %p285 = scmp.eq.s32.totalorder %s33, 0
      %p286 = por %p284, %p285
      %p287 = scmp.le.s32.totalorder 1, %s27
      %p288 = scmp.lt.s32.totalorder %s27, 5
      %p289 = pnand %p287, %p288
      %p290 = pneg %p289
      // Predicated region
      $region9: #{tpu_custom_call.1} parent=5 // pred_check
        _
      $region10: #{tpu_custom_call.1} parent=5 // pred_check_branch
        %292 = sbr.rel (%p289) target = $region12
      $region11: #{tpu_custom_call.1} parent=5 // pred_region
        %s293 = ssub.s32 %s27, 1
      $region12: #{tpu_custom_call.1} parent=5 // pred_fallthru
        _
      %p294 = scmp.lt.s32.totalorder %s27, 4
      // Predicated region
      $region13: #{tpu_custom_call.1} parent=5 // pred_check
        %p295 = pneg %p294
      $region14: #{tpu_custom_call.1} parent=5 // pred_check_branch
        %297 = sbr.rel (%p295) target = $region16
      $region15: #{tpu_custom_call.1} parent=5 // pred_region
        // Predicated region
        $region17: #{tpu_custom_call.1} parent=15 // pred_check
          %p298 = pneg %p59
        $region18: #{tpu_custom_call.1} parent=15 // pred_check_branch
          %300 = sbr.rel (%p298) target = $region20
        $region19: #{tpu_custom_call.1} parent=15 // pred_region
          %s301 = sand.u32 %s49, 1
          %s302 = scalar_lea.sflag [#allocation4], %s301
          %s303 = sand.u32 %s49, 1
          %s304 = smul.addr %s303, 8
          %s305 = scalar_lea.vmem [#allocation3], %s304
          %s307 = ssub.s32 128, 128
          %308 = vsyncadd %s302, %s307
          %s309 = smul.addr %s35, 128
          %s310 = scalar_lea.hbm %s0, %s309
          %s312 = sshll.u32 %s305, 4
          %s313 = int_to_ptr.vmem [resolvable:$true] %s312
          %315 = dma.hbm_to_vmem [thread:$0]  %s310, 128, %s313, %s302
        $region20: #{tpu_custom_call.1} parent=15 // pred_fallthru
          _
        // Predicated region
        $region21: #{tpu_custom_call.1} parent=15 // pred_check
          %p316 = pneg %p87
        $region22: #{tpu_custom_call.1} parent=15 // pred_check_branch
          %318 = sbr.rel (%p316) target = $region24
        $region23: #{tpu_custom_call.1} parent=15 // pred_region
          %s319 = sand.u32 %s27, 1
          %s320 = scalar_lea.sflag [#allocation7], %s319
          %s321 = sand.u32 %s77, 1
          %s322 = smul.addr %s321, 128
          %s323 = scalar_lea.vmem [#allocation6], %s322
          %s324 = smul.u32 16, %s35
          %s326 = ssub.s32 2048, 2048
          %327 = vsyncadd %s320, %s326
          %s328 = smul.addr %s324, 2
          %s329 = sadd.s32 %s34, %s328
          %s330 = smul.addr %s329, 128
          %s331 = scalar_lea.hbm %s1, %s330
          %s332 = sshll.u32 %s323, 4
          %s333 = int_to_ptr.vmem [resolvable:$true] %s332
          %338 = dma.hbm_to_vmem [thread:$0]  %s331, 2048, %s333, %s320, 256, 128, 8
        $region24: #{tpu_custom_call.1} parent=15 // pred_fallthru
          _
        // Predicated region
        $region25: #{tpu_custom_call.1} parent=15 // pred_check
          %p339 = pneg %p115
        $region26: #{tpu_custom_call.1} parent=15 // pred_check_branch
          %341 = sbr.rel (%p339) target = $region28
        $region27: #{tpu_custom_call.1} parent=15 // pred_region
          %s342 = sand.u32 %s27, 1
          %s343 = scalar_lea.sflag [#allocation7], %s342
          %s344 = sand.u32 %s105, 1
          %s345 = smul.addr %s344, 128
          %s346 = scalar_lea.vmem [#allocation8], %s345
          %s347 = smul.u32 16, %s35
          %s349 = ssub.s32 2048, 2048
          %350 = vsyncadd %s343, %s349
          %s351 = smul.addr %s347, 2
          %s352 = sadd.s32 %s34, %s351
          %s353 = smul.addr %s352, 128
          %s354 = scalar_lea.hbm %s2, %s353
          %s355 = sshll.u32 %s346, 4
          %s356 = int_to_ptr.vmem [resolvable:$true] %s355
          %361 = dma.hbm_to_vmem [thread:$0]  %s354, 2048, %s356, %s343, 256, 128, 8
        $region28: #{tpu_custom_call.1} parent=15 // pred_fallthru
          _
        // Predicated region
        $region29: #{tpu_custom_call.1} parent=15 // pred_check
          %p362 = pneg %p143
        $region30: #{tpu_custom_call.1} parent=15 // pred_check_branch
          %364 = sbr.rel (%p362) target = $region32
        $region31: #{tpu_custom_call.1} parent=15 // pred_region
          %s365 = sand.u32 %s133, 1
          %s366 = scalar_lea.sflag [#allocation10], %s365
          %s367 = sand.u32 %s133, 1
          %s368 = smul.addr %s367, 128
          %s369 = scalar_lea.vmem [#allocation9], %s368
          %s370 = smul.u32 16, %s35
          %s372 = ssub.s32 2048, 2048
          %373 = vsyncadd %s366, %s372
          %s374 = smul.addr %s370, 2
          %s375 = sadd.s32 %s34, %s374
          %s376 = smul.addr %s375, 128
          %s377 = scalar_lea.hbm %s3, %s376
          %s378 = sshll.u32 %s369, 4
          %s379 = int_to_ptr.vmem [resolvable:$true] %s378
          %384 = dma.hbm_to_vmem [thread:$0]  %s377, 2048, %s379, %s366, 256, 128, 8
        $region32: #{tpu_custom_call.1} parent=15 // pred_fallthru
          _
        // Predicated region
        $region33: #{tpu_custom_call.1} parent=15 // pred_check
          %p385 = pneg %p169
        $region34: #{tpu_custom_call.1} parent=15 // pred_check_branch
          %387 = sbr.rel (%p385) target = $region36
        $region35: #{tpu_custom_call.1} parent=15 // pred_region
          %p388 = scmp.lt.s32.totalorder %s34, 1
          %s389 = scalar_select %p388, %s34, 1
          %s390 = scalar_lea.vmem %s4, %s389
        $region36: #{tpu_custom_call.1} parent=15 // pred_fallthru
          _
        // Predicated region
        $region37: #{tpu_custom_call.1} parent=15 // pred_check
          %p391 = pneg %p195
        $region38: #{tpu_custom_call.1} parent=15 // pred_check_branch
          %393 = sbr.rel (%p391) target = $region40
        $region39: #{tpu_custom_call.1} parent=15 // pred_region
          %p394 = scmp.lt.s32.totalorder %s34, 1
          %s395 = scalar_select %p394, %s34, 1
          %s396 = scalar_lea.vmem %s5, %s395
        $region40: #{tpu_custom_call.1} parent=15 // pred_fallthru
          _
        // Predicated region
        $region41: #{tpu_custom_call.1} parent=15 // pred_check
          %p397 = pneg %p221
        $region42: #{tpu_custom_call.1} parent=15 // pred_check_branch
          %399 = sbr.rel (%p397) target = $region44
        $region43: #{tpu_custom_call.1} parent=15 // pred_region
          %p400 = scmp.lt.s32.totalorder %s34, 1
          %s401 = scalar_select %p400, %s34, 1
          %s402 = scalar_lea.vmem %s6, %s401
        $region44: #{tpu_custom_call.1} parent=15 // pred_fallthru
          _
      $region16: #{tpu_custom_call.1} parent=5 // pred_fallthru
        _
      %p403 = scmp.le.s32.totalorder 1, %s27
      %p404 = scmp.lt.s32.totalorder %s27, 5
      %p405 = pnand %p403, %p404
      %p406 = pneg %p405
      // Predicated region
      $region45: #{tpu_custom_call.1} parent=5 // pred_check
        _
      $region46: #{tpu_custom_call.1} parent=5 // pred_check_branch
        %408 = sbr.rel (%p405) target = $region48
      $region47: #{tpu_custom_call.1} parent=5 // pred_region
        %s409 = ssub.s32 %s27, 1
        %s410 = sand.u32 %s52, 1
        %s411 = scalar_lea.sflag [#allocation4], %s410
        %s412 = sand.u32 %s52, 1
        %s413 = smul.addr %s412, 8
        %s414 = scalar_lea.vmem [#allocation3], %s413
        // Predicated region
        $region49: #{tpu_custom_call.1} parent=47 // pred_check
          %p415 = pneg %p65
        $region50: #{tpu_custom_call.1} parent=47 // pred_check_branch
          %417 = sbr.rel (%p415) target = $region52
        $region51: #{tpu_custom_call.1} parent=47 // pred_region
          %418 = dma.done %s411, 128
        $region52: #{tpu_custom_call.1} parent=47 // pred_fallthru
          _
        %s419 = sand.u32 %s32, 1
        %s420 = scalar_lea.sflag [#allocation7], %s419
        %s421 = sand.u32 %s80, 1
        %s422 = smul.addr %s421, 128
        %s423 = scalar_lea.vmem [#allocation6], %s422
        // Predicated region
        $region53: #{tpu_custom_call.1} parent=47 // pred_check
          %p424 = pneg %p93
        $region54: #{tpu_custom_call.1} parent=47 // pred_check_branch
          %426 = sbr.rel (%p424) target = $region56
        $region55: #{tpu_custom_call.1} parent=47 // pred_region
          %427 = dma.done %s420, 2048
        $region56: #{tpu_custom_call.1} parent=47 // pred_fallthru
          _
        %s428 = sand.u32 %s32, 1
        %s429 = scalar_lea.sflag [#allocation7], %s428
        %s430 = sand.u32 %s108, 1
        %s431 = smul.addr %s430, 128
        %s432 = scalar_lea.vmem [#allocation8], %s431
        // Predicated region
        $region57: #{tpu_custom_call.1} parent=47 // pred_check
          %p433 = pneg %p121
        $region58: #{tpu_custom_call.1} parent=47 // pred_check_branch
          %435 = sbr.rel (%p433) target = $region60
        $region59: #{tpu_custom_call.1} parent=47 // pred_region
          %436 = dma.done %s429, 2048
        $region60: #{tpu_custom_call.1} parent=47 // pred_fallthru
          _
        %s437 = sand.u32 %s136, 1
        %s438 = scalar_lea.sflag [#allocation10], %s437
        %s439 = sand.u32 %s136, 1
        %s440 = smul.addr %s439, 128
        %s441 = scalar_lea.vmem [#allocation9], %s440
        // Predicated region
        $region61: #{tpu_custom_call.1} parent=47 // pred_check
          %p442 = pneg %p149
        $region62: #{tpu_custom_call.1} parent=47 // pred_check_branch
          %444 = sbr.rel (%p442) target = $region64
        $region63: #{tpu_custom_call.1} parent=47 // pred_region
          %445 = dma.done %s438, 2048
        $region64: #{tpu_custom_call.1} parent=47 // pred_fallthru
          _
        %s446 = sand.u32 %s52, 1
        %s447 = scalar_lea.sflag [#allocation4], %s446
        %s448 = sand.u32 %s52, 1
        %s449 = smul.addr %s448, 8
        %s450 = scalar_lea.vmem [#allocation3], %s449
        %p451 = pneg %p65
        %p452 = pneg %p62
        %s453 = sand.u32 %s32, 1
        %s454 = scalar_lea.sflag [#allocation7], %s453
        %s455 = sand.u32 %s80, 1
        %s456 = smul.addr %s455, 128
        %s457 = scalar_lea.vmem [#allocation6], %s456
        %p458 = pneg %p93
        %p459 = pneg %p90
        %s460 = sand.u32 %s32, 1
        %s461 = scalar_lea.sflag [#allocation7], %s460
        %s462 = sand.u32 %s108, 1
        %s463 = smul.addr %s462, 128
        %s464 = scalar_lea.vmem [#allocation8], %s463
        %p465 = pneg %p121
        %p466 = pneg %p118
        %s467 = sand.u32 %s136, 1
        %s468 = scalar_lea.sflag [#allocation10], %s467
        %s469 = sand.u32 %s136, 1
        %s470 = smul.addr %s469, 128
        %s471 = scalar_lea.vmem [#allocation9], %s470
        %p472 = pneg %p149
        %p473 = pneg %p146
        %p474 = scmp.lt.s32.totalorder %s36, 1
        %s475 = scalar_select %p474, %s36, 1
        %s476 = scalar_lea.vmem %s4, %s475
        %p477 = pneg %p175
        %p478 = pneg %p172
        %p479 = scmp.lt.s32.totalorder %s36, 1
        %s480 = scalar_select %p479, %s36, 1
        %s481 = scalar_lea.vmem %s5, %s480
        %p482 = pneg %p201
        %p483 = pneg %p198
        %p484 = scmp.lt.s32.totalorder %s36, 1
        %s485 = scalar_select %p484, %s36, 1
        %s486 = scalar_lea.vmem %s6, %s485
        %p487 = pneg %p227
        %p488 = pneg %p224
        %p489 = pneg %p253
        %p490 = pneg %p250
        %s491 = sand.u32 %s240, 1
        %s492 = scalar_lea.sflag [#allocation5], %s491
        %s493 = sand.u32 %s240, 1
        %s494 = smul.addr %s493, 8
        %s495 = scalar_lea.vmem [#allocation11], %s494
        %p496 = pneg %p279
        %p497 = pneg %p276
        %p498 = scmp.lt.s32.totalorder %s36, 1
        %s499 = scalar_select %p498, %s36, 1
        %s500 = scalar_lea.vmem %s8, %s499
        %s501 = smul.u32 16, %s37
        %s502 = smul.u32 16, %s37
        %s503 = smul.u32 16, %s37
        %p504 = scmp.lt.s32.totalorder %s36, 1
        %s505 = scalar_select %p504, %s36, 1
        %s506 = scalar_lea.vmem %s4, %s505
        %p507 = scmp.lt.s32.totalorder %s36, 1
        %s508 = scalar_select %p507, %s36, 1
        %s509 = scalar_lea.vmem %s5, %s508
        %p510 = scmp.lt.s32.totalorder %s36, 1
        %s511 = scalar_select %p510, %s36, 1
        %s512 = scalar_lea.vmem %s6, %s511
        %p513 = scmp.lt.s32.totalorder %s36, 1
        %s514 = scalar_select %p513, %s36, 1
        %s515 = scalar_lea.vmem %s8, %s514
        %v516 = vld [vmem:[%s432] sm:$0xff]
        %v517 = vld [vmem:[%s432 + $0x8] sm:$0xff]
        %v518 = vld [vmem:[%s432 + $0x10] sm:$0xff]
        %v519 = vld [vmem:[%s432 + $0x18] sm:$0xff]
        %v520 = vld [vmem:[%s432 + $0x20] sm:$0xff]
        %v521 = vld [vmem:[%s432 + $0x28] sm:$0xff]
        %v522 = vld [vmem:[%s432 + $0x30] sm:$0xff]
        %v523 = vld [vmem:[%s432 + $0x38] sm:$0xff]
        %v524 = vld [vmem:[%s432 + $0x40] sm:$0xff]
        %v525 = vld [vmem:[%s432 + $0x48] sm:$0xff]
        %v526 = vld [vmem:[%s432 + $0x50] sm:$0xff]
        %v527 = vld [vmem:[%s432 + $0x58] sm:$0xff]
        %v528 = vld [vmem:[%s432 + $0x60] sm:$0xff]
        %v529 = vld [vmem:[%s432 + $0x68] sm:$0xff]
        %v530 = vld [vmem:[%s432 + $0x70] sm:$0xff]
        %v531 = vld [vmem:[%s432 + $0x78] sm:$0xff]
        %v532 = vmax.f32 %v516, 0.0
        %v533 = vmax.f32 %v517, 0.0
        %v534 = vmax.f32 %v518, 0.0
        %v535 = vmax.f32 %v519, 0.0
        %v536 = vmax.f32 %v520, 0.0
        %v537 = vmax.f32 %v521, 0.0
        %v538 = vmax.f32 %v522, 0.0
        %v539 = vmax.f32 %v523, 0.0
        %v540 = vmax.f32 %v524, 0.0
        %v541 = vmax.f32 %v525, 0.0
        %v542 = vmax.f32 %v526, 0.0
        %v543 = vmax.f32 %v527, 0.0
        %v544 = vmax.f32 %v528, 0.0
        %v545 = vmax.f32 %v529, 0.0
        %v546 = vmax.f32 %v530, 0.0
        %v547 = vmax.f32 %v531, 0.0
        %v548 = vand.u32 2147483647, %v516
        %v549 = vand.u32 2147483647, %v517
        %v550 = vand.u32 2147483647, %v518
        %v551 = vand.u32 2147483647, %v519
        %v552 = vand.u32 2147483647, %v520
        %v553 = vand.u32 2147483647, %v521
        %v554 = vand.u32 2147483647, %v522
        %v555 = vand.u32 2147483647, %v523
        %v556 = vand.u32 2147483647, %v524
        %v557 = vand.u32 2147483647, %v525
        %v558 = vand.u32 2147483647, %v526
        %v559 = vand.u32 2147483647, %v527
        %v560 = vand.u32 2147483647, %v528
        %v561 = vand.u32 2147483647, %v529
        %v562 = vand.u32 2147483647, %v530
        %v563 = vand.u32 2147483647, %v531
        %v564 = vsub.f32 0.0, %v548
        %v565 = vsub.f32 0.0, %v549
        %v566 = vsub.f32 0.0, %v550
        %v567 = vsub.f32 0.0, %v551
        %v568 = vsub.f32 0.0, %v552
        %v569 = vsub.f32 0.0, %v553
        %v570 = vsub.f32 0.0, %v554
        %v571 = vsub.f32 0.0, %v555
        %v572 = vsub.f32 0.0, %v556
        %v573 = vsub.f32 0.0, %v557
        %v574 = vsub.f32 0.0, %v558
        %v575 = vsub.f32 0.0, %v559
        %v576 = vsub.f32 0.0, %v560
        %v577 = vsub.f32 0.0, %v561
        %v578 = vsub.f32 0.0, %v562
        %v579 = vsub.f32 0.0, %v563
        %v580 = vmul.f32 %v564, 1.442695
        %v581 = vpow.pop %v580
        %v582 = vmul.f32 %v565, 1.442695
        %v583 = vpow.pop %v582
        %v584 = vmul.f32 %v566, 1.442695
        %v585 = vpow.pop %v584
        %v586 = vmul.f32 %v567, 1.442695
        %v587 = vpow.pop %v586
        %v588 = vmul.f32 %v568, 1.442695
        %v589 = vpow.pop %v588
        %v590 = vmul.f32 %v569, 1.442695
        %v591 = vpow.pop %v590
        %v592 = vmul.f32 %v570, 1.442695
        %v593 = vpow.pop %v592
        %v594 = vmul.f32 %v571, 1.442695
        %v595 = vpow.pop %v594
        %v596 = vmul.f32 %v572, 1.442695
        %v597 = vpow.pop %v596
        %v598 = vmul.f32 %v573, 1.442695
        %v599 = vpow.pop %v598
        %v600 = vmul.f32 %v574, 1.442695
        %v601 = vpow.pop %v600
        %v602 = vmul.f32 %v575, 1.442695
        %v603 = vpow.pop %v602
        %v604 = vmul.f32 %v576, 1.442695
        %v605 = vpow.pop %v604
        %v606 = vmul.f32 %v577, 1.442695
        %v607 = vpow.pop %v606
        %v608 = vmul.f32 %v578, 1.442695
        %v609 = vpow.pop %v608
        %v610 = vmul.f32 %v579, 1.442695
        %v611 = vpow.pop %v610
        %v612 = vadd.f32 %v581, 1.0
        %v613 = vlog2.pop %v612
        %v614 = vmul.f32 %v613, 0.6931472
        %v615 = vmul.f32 -0.5, %v581
        %v616 = vadd.f32 %v615, 1.0
        %v617 = vmul.f32 %v616, %v581
        %v618 = vand.u32 2147483647, %v581
        %vm619 = vcmp.lt.f32.partialorder %v618, 0.0004427343
        %v620 = vsel %vm619, %v617, %v614
        %v621 = vadd.f32 %v583, 1.0
        %v622 = vlog2.pop %v621
        %v623 = vmul.f32 %v622, 0.6931472
        %v624 = vmul.f32 -0.5, %v583
        %v625 = vadd.f32 %v624, 1.0
        %v626 = vmul.f32 %v625, %v583
        %v627 = vand.u32 2147483647, %v583
        %vm628 = vcmp.lt.f32.partialorder %v627, 0.0004427343
        %v629 = vsel %vm628, %v626, %v623
        %v630 = vadd.f32 %v585, 1.0
        %v631 = vlog2.pop %v630
        %v632 = vmul.f32 %v631, 0.6931472
        %v633 = vmul.f32 -0.5, %v585
        %v634 = vadd.f32 %v633, 1.0
        %v635 = vmul.f32 %v634, %v585
        %v636 = vand.u32 2147483647, %v585
        %vm637 = vcmp.lt.f32.partialorder %v636, 0.0004427343
        %v638 = vsel %vm637, %v635, %v632
        %v639 = vadd.f32 %v587, 1.0
        %v640 = vlog2.pop %v639
        %v641 = vmul.f32 %v640, 0.6931472
        %v642 = vmul.f32 -0.5, %v587
        %v643 = vadd.f32 %v642, 1.0
        %v644 = vmul.f32 %v643, %v587
        %v645 = vand.u32 2147483647, %v587
        %vm646 = vcmp.lt.f32.partialorder %v645, 0.0004427343
        %v647 = vsel %vm646, %v644, %v641
        %v648 = vadd.f32 %v589, 1.0
        %v649 = vlog2.pop %v648
        %v650 = vmul.f32 %v649, 0.6931472
        %v651 = vmul.f32 -0.5, %v589
        %v652 = vadd.f32 %v651, 1.0
        %v653 = vmul.f32 %v652, %v589
        %v654 = vand.u32 2147483647, %v589
        %vm655 = vcmp.lt.f32.partialorder %v654, 0.0004427343
        %v656 = vsel %vm655, %v653, %v650
        %v657 = vadd.f32 %v591, 1.0
        %v658 = vlog2.pop %v657
        %v659 = vmul.f32 %v658, 0.6931472
        %v660 = vmul.f32 -0.5, %v591
        %v661 = vadd.f32 %v660, 1.0
        %v662 = vmul.f32 %v661, %v591
        %v663 = vand.u32 2147483647, %v591
        %vm664 = vcmp.lt.f32.partialorder %v663, 0.0004427343
        %v665 = vsel %vm664, %v662, %v659
        %v666 = vadd.f32 %v593, 1.0
        %v667 = vlog2.pop %v666
        %v668 = vmul.f32 %v667, 0.6931472
        %v669 = vmul.f32 -0.5, %v593
        %v670 = vadd.f32 %v669, 1.0
        %v671 = vmul.f32 %v670, %v593
        %v672 = vand.u32 2147483647, %v593
        %vm673 = vcmp.lt.f32.partialorder %v672, 0.0004427343
        %v674 = vsel %vm673, %v671, %v668
        %v675 = vadd.f32 %v595, 1.0
        %v676 = vlog2.pop %v675
        %v677 = vmul.f32 %v676, 0.6931472
        %v678 = vmul.f32 -0.5, %v595
        %v679 = vadd.f32 %v678, 1.0
        %v680 = vmul.f32 %v679, %v595
        %v681 = vand.u32 2147483647, %v595
        %vm682 = vcmp.lt.f32.partialorder %v681, 0.0004427343
        %v683 = vsel %vm682, %v680, %v677
        %v684 = vadd.f32 %v597, 1.0
        %v685 = vlog2.pop %v684
        %v686 = vmul.f32 %v685, 0.6931472
        %v687 = vmul.f32 -0.5, %v597
        %v688 = vadd.f32 %v687, 1.0
        %v689 = vmul.f32 %v688, %v597
        %v690 = vand.u32 2147483647, %v597
        %vm691 = vcmp.lt.f32.partialorder %v690, 0.0004427343
        %v692 = vsel %vm691, %v689, %v686
        %v693 = vadd.f32 %v599, 1.0
        %v694 = vlog2.pop %v693
        %v695 = vmul.f32 %v694, 0.6931472
        %v696 = vmul.f32 -0.5, %v599
        %v697 = vadd.f32 %v696, 1.0
        %v698 = vmul.f32 %v697, %v599
        %v699 = vand.u32 2147483647, %v599
        %vm700 = vcmp.lt.f32.partialorder %v699, 0.0004427343
        %v701 = vsel %vm700, %v698, %v695
        %v702 = vadd.f32 %v601, 1.0
        %v703 = vlog2.pop %v702
        %v704 = vmul.f32 %v703, 0.6931472
        %v705 = vmul.f32 -0.5, %v601
        %v706 = vadd.f32 %v705, 1.0
        %v707 = vmul.f32 %v706, %v601
        %v708 = vand.u32 2147483647, %v601
        %vm709 = vcmp.lt.f32.partialorder %v708, 0.0004427343
        %v710 = vsel %vm709, %v707, %v704
        %v711 = vadd.f32 %v603, 1.0
        %v712 = vlog2.pop %v711
        %v713 = vmul.f32 %v712, 0.6931472
        %v714 = vmul.f32 -0.5, %v603
        %v715 = vadd.f32 %v714, 1.0
        %v716 = vmul.f32 %v715, %v603
        %v717 = vand.u32 2147483647, %v603
        %vm718 = vcmp.lt.f32.partialorder %v717, 0.0004427343
        %v719 = vsel %vm718, %v716, %v713
        %v720 = vadd.f32 %v605, 1.0
        %v721 = vlog2.pop %v720
        %v722 = vmul.f32 %v721, 0.6931472
        %v723 = vmul.f32 -0.5, %v605
        %v724 = vadd.f32 %v723, 1.0
        %v725 = vmul.f32 %v724, %v605
        %v726 = vand.u32 2147483647, %v605
        %vm727 = vcmp.lt.f32.partialorder %v726, 0.0004427343
        %v728 = vsel %vm727, %v725, %v722
        %v729 = vadd.f32 %v607, 1.0
        %v730 = vlog2.pop %v729
        %v731 = vmul.f32 %v730, 0.6931472
        %v732 = vmul.f32 -0.5, %v607
        %v733 = vadd.f32 %v732, 1.0
        %v734 = vmul.f32 %v733, %v607
        %v735 = vand.u32 2147483647, %v607
        %vm736 = vcmp.lt.f32.partialorder %v735, 0.0004427343
        %v737 = vsel %vm736, %v734, %v731
        %v738 = vadd.f32 %v609, 1.0
        %v739 = vlog2.pop %v738
        %v740 = vmul.f32 %v739, 0.6931472
        %v741 = vmul.f32 -0.5, %v609
        %v742 = vadd.f32 %v741, 1.0
        %v743 = vmul.f32 %v742, %v609
        %v744 = vand.u32 2147483647, %v609
        %vm745 = vcmp.lt.f32.partialorder %v744, 0.0004427343
        %v746 = vsel %vm745, %v743, %v740
        %v747 = vadd.f32 %v611, 1.0
        %v748 = vlog2.pop %v747
        %v749 = vmul.f32 %v748, 0.6931472
        %v750 = vmul.f32 -0.5, %v611
        %v751 = vadd.f32 %v750, 1.0
        %v752 = vmul.f32 %v751, %v611
        %v753 = vand.u32 2147483647, %v611
        %vm754 = vcmp.lt.f32.partialorder %v753, 0.0004427343
        %v755 = vsel %vm754, %v752, %v749
        %v756 = vadd.f32 %v532, %v620
        %v757 = vadd.f32 %v533, %v629
        %v758 = vadd.f32 %v534, %v638
        %v759 = vadd.f32 %v535, %v647
        %v760 = vadd.f32 %v536, %v656
        %v761 = vadd.f32 %v537, %v665
        %v762 = vadd.f32 %v538, %v674
        %v763 = vadd.f32 %v539, %v683
        %v764 = vadd.f32 %v540, %v692
        %v765 = vadd.f32 %v541, %v701
        %v766 = vadd.f32 %v542, %v710
        %v767 = vadd.f32 %v543, %v719
        %v768 = vadd.f32 %v544, %v728
        %v769 = vadd.f32 %v545, %v737
        %v770 = vadd.f32 %v546, %v746
        %v771 = vadd.f32 %v547, %v755
        %v772 = vmax.f32 %v756, 1e-30
        %v773 = vmax.f32 %v757, 1e-30
        %v774 = vmax.f32 %v758, 1e-30
        %v775 = vmax.f32 %v759, 1e-30
        %v776 = vmax.f32 %v760, 1e-30
        %v777 = vmax.f32 %v761, 1e-30
        %v778 = vmax.f32 %v762, 1e-30
        %v779 = vmax.f32 %v763, 1e-30
        %v780 = vmax.f32 %v764, 1e-30
        %v781 = vmax.f32 %v765, 1e-30
        %v782 = vmax.f32 %v766, 1e-30
        %v783 = vmax.f32 %v767, 1e-30
        %v784 = vmax.f32 %v768, 1e-30
        %v785 = vmax.f32 %v769, 1e-30
        %v786 = vmax.f32 %v770, 1e-30
        %v787 = vmax.f32 %v771, 1e-30
        %v788 = vld [vmem:[%s423] sm:$0xff]
        %v789 = vld [vmem:[%s423 + $0x8] sm:$0xff]
        %v790 = vld [vmem:[%s423 + $0x10] sm:$0xff]
        %v791 = vld [vmem:[%s423 + $0x18] sm:$0xff]
        %v792 = vld [vmem:[%s423 + $0x20] sm:$0xff]
        %v793 = vld [vmem:[%s423 + $0x28] sm:$0xff]
        %v794 = vld [vmem:[%s423 + $0x30] sm:$0xff]
        %v795 = vld [vmem:[%s423 + $0x38] sm:$0xff]
        %v796 = vld [vmem:[%s423 + $0x40] sm:$0xff]
        %v797 = vld [vmem:[%s423 + $0x48] sm:$0xff]
        %v798 = vld [vmem:[%s423 + $0x50] sm:$0xff]
        %v799 = vld [vmem:[%s423 + $0x58] sm:$0xff]
        %v800 = vld [vmem:[%s423 + $0x60] sm:$0xff]
        %v801 = vld [vmem:[%s423 + $0x68] sm:$0xff]
        %v802 = vld [vmem:[%s423 + $0x70] sm:$0xff]
        %v803 = vld [vmem:[%s423 + $0x78] sm:$0xff]
        %v804 = vld [vmem:[%s441] sm:$0xff]
        %v805 = vld [vmem:[%s441 + $0x8] sm:$0xff]
        %v806 = vld [vmem:[%s441 + $0x10] sm:$0xff]
        %v807 = vld [vmem:[%s441 + $0x18] sm:$0xff]
        %v808 = vld [vmem:[%s441 + $0x20] sm:$0xff]
        %v809 = vld [vmem:[%s441 + $0x28] sm:$0xff]
        %v810 = vld [vmem:[%s441 + $0x30] sm:$0xff]
        %v811 = vld [vmem:[%s441 + $0x38] sm:$0xff]
        %v812 = vld [vmem:[%s441 + $0x40] sm:$0xff]
        %v813 = vld [vmem:[%s441 + $0x48] sm:$0xff]
        %v814 = vld [vmem:[%s441 + $0x50] sm:$0xff]
        %v815 = vld [vmem:[%s441 + $0x58] sm:$0xff]
        %v816 = vld [vmem:[%s441 + $0x60] sm:$0xff]
        %v817 = vld [vmem:[%s441 + $0x68] sm:$0xff]
        %v818 = vld [vmem:[%s441 + $0x70] sm:$0xff]
        %v819 = vld [vmem:[%s441 + $0x78] sm:$0xff]
        %v820 = vmul.f32 %v804, %v772
        %v821 = vmul.f32 %v805, %v773
        %v822 = vmul.f32 %v806, %v774
        %v823 = vmul.f32 %v807, %v775
        %v824 = vmul.f32 %v808, %v776
        %v825 = vmul.f32 %v809, %v777
        %v826 = vmul.f32 %v810, %v778
        %v827 = vmul.f32 %v811, %v779
        %v828 = vmul.f32 %v812, %v780
        %v829 = vmul.f32 %v813, %v781
        %v830 = vmul.f32 %v814, %v782
        %v831 = vmul.f32 %v815, %v783
        %v832 = vmul.f32 %v816, %v784
        %v833 = vmul.f32 %v817, %v785
        %v834 = vmul.f32 %v818, %v786
        %v835 = vmul.f32 %v819, %v787
        %v836 = vadd.f32 %v788, %v820
        %v837 = vadd.f32 %v789, %v821
        %v838 = vadd.f32 %v790, %v822
        %v839 = vadd.f32 %v791, %v823
        %v840 = vadd.f32 %v792, %v824
        %v841 = vadd.f32 %v793, %v825
        %v842 = vadd.f32 %v794, %v826
        %v843 = vadd.f32 %v795, %v827
        %v844 = vadd.f32 %v796, %v828
        %v845 = vadd.f32 %v797, %v829
        %v846 = vadd.f32 %v798, %v830
        %v847 = vadd.f32 %v799, %v831
        %v848 = vadd.f32 %v800, %v832
        %v849 = vadd.f32 %v801, %v833
        %v850 = vadd.f32 %v802, %v834
        %v851 = vadd.f32 %v803, %v835
        %v852 = vld [vmem:[%s509] sm:$0x1]
        %v853 = vmax.f32 %v852, 0.0
        %v854 = vand.u32 2147483647, %v852
        %v855 = vsub.f32 0.0, %v854
        %v856 = vmul.f32 %v855, 1.442695
        %v857 = vpow.pop %v856
        %v858 = vadd.f32 %v857, 1.0
        %v859 = vlog2.pop %v858
        %v860 = vmul.f32 %v859, 0.6931472
        %v861 = vmul.f32 -0.5, %v857
        %v862 = vadd.f32 %v861, 1.0
        %v863 = vmul.f32 %v862, %v857
        %v864 = vand.u32 2147483647, %v857
        %vm865 = vcmp.lt.f32.partialorder %v864, 0.0004427343
        %v866 = vsel %vm865, %v863, %v860
        %v867 = vadd.f32 %v853, %v866
        %v868 = vmax.f32 %v867, 1e-30
        %p869 = scmp.eq.s32.totalorder %s37, 0
        // Predicated region
        $region65: #{tpu_custom_call.1} parent=47 // pred_check
          %p870 = pneg %p869
        $region66: #{tpu_custom_call.1} parent=47 // pred_check_branch
          %872 = sbr.rel (%p870) target = $region68
        $region67: #{tpu_custom_call.1} parent=47 // pred_region
          %873 = vst [vmem:[#allocation2] sm:$0xff] 0.0
        $region68: #{tpu_custom_call.1} parent=47 // pred_fallthru
          _
        %v874 = vld [vmem:[#allocation2] sm:$0xff]
        %v875 = vld [vmem:[%s414] sm:$0xff]
        %876 = vmatprep.subr.mxu0 0.0
        %877 = vmatpush1.msra.mxu0 %v836
        %878 = vmatprep.subr.mxu0 0.0
        %879 = vmatpush1.msra.mxu0 %v837
        %880 = vmatprep.subr.mxu0 0.0
        %881 = vmatpush1.msra.mxu0 %v838
        %882 = vmatprep.subr.mxu0 0.0
        %883 = vmatpush1.msra.mxu0 %v839
        %884 = vmatprep.subr.mxu0 0.0
        %885 = vmatpush1.msra.mxu0 %v840
        %886 = vmatprep.subr.mxu0 0.0
        %887 = vmatpush1.msra.mxu0 %v841
        %888 = vmatprep.subr.mxu0 0.0
        %889 = vmatpush1.msra.mxu0 %v842
        %890 = vmatprep.subr.mxu0 0.0
        %891 = vmatpush1.msra.mxu0 %v843
        %892 = vmatprep.subr.mxu0 0.0
        %893 = vmatpush1.msra.mxu0 %v844
        %894 = vmatprep.subr.mxu0 0.0
        %895 = vmatpush1.msra.mxu0 %v845
        %896 = vmatprep.subr.mxu0 0.0
        %897 = vmatpush1.msra.mxu0 %v846
        %898 = vmatprep.subr.mxu0 0.0
        %899 = vmatpush1.msra.mxu0 %v847
        %900 = vmatprep.subr.mxu0 0.0
        %901 = vmatpush1.msra.mxu0 %v848
        %902 = vmatprep.subr.mxu0 0.0
        %903 = vmatpush1.msra.mxu0 %v849
        %904 = vmatprep.subr.mxu0 0.0
        %905 = vmatpush1.msra.mxu0 %v850
        %906 = vmatprep.subr.mxu0 0.0
        %907 = vmatpush1.msra.mxu0 %v851
        %908 = vmatprep.subr.mxu0 0.0
        %909 = vmatpush1.msra.mxu0 0.0
        %910 = vmatprep.subr.mxu0 0.0
        %911 = vmatpush1.msra.mxu0 0.0
        %912 = vmatprep.subr.mxu0 0.0
        %913 = vmatpush1.msra.mxu0 0.0
        %914 = vmatprep.subr.mxu0 0.0
        %915 = vmatpush1.msra.mxu0 0.0
        %916 = vmatprep.subr.mxu0 0.0
        %917 = vmatpush1.msra.mxu0 0.0
        %918 = vmatprep.subr.mxu0 0.0
        %919 = vmatpush1.msra.mxu0 0.0
        %920 = vmatprep.subr.mxu0 0.0
        %921 = vmatpush1.msra.mxu0 0.0
        %922 = vmatprep.subr.mxu0 0.0
        %923 = vmatpush1.msra.mxu0 0.0
        %924 = vmatprep.subr.mxu0 0.0
        %925 = vmatpush1.msra.mxu0 0.0
        %926 = vmatprep.subr.mxu0 0.0
        %927 = vmatpush1.msra.mxu0 0.0
        %928 = vmatprep.subr.mxu0 0.0
        %929 = vmatpush1.msra.mxu0 0.0
        %930 = vmatprep.subr.mxu0 0.0
        %931 = vmatpush1.msra.mxu0 0.0
        %932 = vmatprep.subr.mxu0 0.0
        %933 = vmatpush1.msra.mxu0 0.0
        %934 = vmatprep.subr.mxu0 0.0
        %935 = vmatpush1.msra.mxu0 0.0
        %936 = vmatprep.subr.mxu0 0.0
        %937 = vmatpush1.msra.mxu0 0.0
        %938 = vmatprep.subr.mxu0 0.0
        %939 = vmatpush1.msra.mxu0 0.0
        %940 = vmatprep.mubr.f32.mxu0 0.0
        %941 = vmatmul.mubr.f32.gmra.mrb[0].mxu0 %v875
        %v942 = vpop.f32.mrb[0].mxu0
        %v943 = vadd.f32 0.0, %v942
        %v944 = vpop.f32.mrb[0].mxu0
        %945 = vdwg.mxu0
        %v946 = vadd.f32 %v874, %v943
        %947 = vst [vmem:[#allocation2] sm:$0xff] %v946
        %v948 = vld [vmem:[%s423] sm:$0xff]
        %v949 = vld [vmem:[%s423 + $0x8] sm:$0xff]
        %v950 = vld [vmem:[%s423 + $0x10] sm:$0xff]
        %v951 = vld [vmem:[%s423 + $0x18] sm:$0xff]
        %v952 = vld [vmem:[%s423 + $0x20] sm:$0xff]
        %v953 = vld [vmem:[%s423 + $0x28] sm:$0xff]
        %v954 = vld [vmem:[%s423 + $0x30] sm:$0xff]
        %v955 = vld [vmem:[%s423 + $0x38] sm:$0xff]
        %v956 = vld [vmem:[%s423 + $0x40] sm:$0xff]
        %v957 = vld [vmem:[%s423 + $0x48] sm:$0xff]
        %v958 = vld [vmem:[%s423 + $0x50] sm:$0xff]
        %v959 = vld [vmem:[%s423 + $0x58] sm:$0xff]
        %v960 = vld [vmem:[%s423 + $0x60] sm:$0xff]
        %v961 = vld [vmem:[%s423 + $0x68] sm:$0xff]
        %v962 = vld [vmem:[%s423 + $0x70] sm:$0xff]
        %v963 = vld [vmem:[%s423 + $0x78] sm:$0xff]
        %v964 = vmul.f32 %v772, %v772
        %v965 = vmul.f32 %v773, %v773
        %v966 = vmul.f32 %v774, %v774
        %v967 = vmul.f32 %v775, %v775
        %v968 = vmul.f32 %v776, %v776
        %v969 = vmul.f32 %v777, %v777
        %v970 = vmul.f32 %v778, %v778
        %v971 = vmul.f32 %v779, %v779
        %v972 = vmul.f32 %v780, %v780
        %v973 = vmul.f32 %v781, %v781
        %v974 = vmul.f32 %v782, %v782
        %v975 = vmul.f32 %v783, %v783
        %v976 = vmul.f32 %v784, %v784
        %v977 = vmul.f32 %v785, %v785
        %v978 = vmul.f32 %v786, %v786
        %v979 = vmul.f32 %v787, %v787
        %v980 = vmul.f32 %v948, %v948
        %v981 = vmul.f32 %v949, %v949
        %v982 = vmul.f32 %v950, %v950
        %v983 = vmul.f32 %v951, %v951
        %v984 = vmul.f32 %v952, %v952
        %v985 = vmul.f32 %v953, %v953
        %v986 = vmul.f32 %v954, %v954
        %v987 = vmul.f32 %v955, %v955
        %v988 = vmul.f32 %v956, %v956
        %v989 = vmul.f32 %v957, %v957
        %v990 = vmul.f32 %v958, %v958
        %v991 = vmul.f32 %v959, %v959
        %v992 = vmul.f32 %v960, %v960
        %v993 = vmul.f32 %v961, %v961
        %v994 = vmul.f32 %v962, %v962
        %v995 = vmul.f32 %v963, %v963
        %v996 = vadd.f32 %v964, %v980
        %v997 = vadd.f32 %v965, %v981
        %v998 = vadd.f32 %v966, %v982
        %v999 = vadd.f32 %v967, %v983
        %v1000 = vadd.f32 %v968, %v984
        %v1001 = vadd.f32 %v969, %v985
        %v1002 = vadd.f32 %v970, %v986
        %v1003 = vadd.f32 %v971, %v987
        %v1004 = vadd.f32 %v972, %v988
        %v1005 = vadd.f32 %v973, %v989
        %v1006 = vadd.f32 %v974, %v990
        %v1007 = vadd.f32 %v975, %v991
        %v1008 = vadd.f32 %v976, %v992
        %v1009 = vadd.f32 %v977, %v993
        %v1010 = vadd.f32 %v978, %v994
        %v1011 = vadd.f32 %v979, %v995
        %v1012 = vmul.f32 %v996, 50.0
        %v1013 = vmul.f32 %v997, 50.0
        %v1014 = vmul.f32 %v998, 50.0
        %v1015 = vmul.f32 %v999, 50.0
        %v1016 = vmul.f32 %v1000, 50.0
        %v1017 = vmul.f32 %v1001, 50.0
        %v1018 = vmul.f32 %v1002, 50.0
        %v1019 = vmul.f32 %v1003, 50.0
        %v1020 = vmul.f32 %v1004, 50.0
        %v1021 = vmul.f32 %v1005, 50.0
        %v1022 = vmul.f32 %v1006, 50.0
        %v1023 = vmul.f32 %v1007, 50.0
        %v1024 = vmul.f32 %v1008, 50.0
        %v1025 = vmul.f32 %v1009, 50.0
        %v1026 = vmul.f32 %v1010, 50.0
        %v1027 = vmul.f32 %v1011, 50.0
        %v1028 = vlog2.pop %v772
        %v1029 = vmul.f32 %v1028, 0.6931472
        %v1030 = vlog2.pop %v773
        %v1031 = vmul.f32 %v1030, 0.6931472
        %v1032 = vlog2.pop %v774
        %v1033 = vmul.f32 %v1032, 0.6931472
        %v1034 = vlog2.pop %v775
        %v1035 = vmul.f32 %v1034, 0.6931472
        %v1036 = vlog2.pop %v776
        %v1037 = vmul.f32 %v1036, 0.6931472
        %v1038 = vlog2.pop %v777
        %v1039 = vmul.f32 %v1038, 0.6931472
        %v1040 = vlog2.pop %v778
        %v1041 = vmul.f32 %v1040, 0.6931472
        %v1042 = vlog2.pop %v779
        %v1043 = vmul.f32 %v1042, 0.6931472
        %v1044 = vlog2.pop %v780
        %v1045 = vmul.f32 %v1044, 0.6931472
        %v1046 = vlog2.pop %v781
        %v1047 = vmul.f32 %v1046, 0.6931472
        %v1048 = vlog2.pop %v782
        %v1049 = vmul.f32 %v1048, 0.6931472
        %v1050 = vlog2.pop %v783
        %v1051 = vmul.f32 %v1050, 0.6931472
        %v1052 = vlog2.pop %v784
        %v1053 = vmul.f32 %v1052, 0.6931472
        %v1054 = vlog2.pop %v785
        %v1055 = vmul.f32 %v1054, 0.6931472
        %v1056 = vlog2.pop %v786
        %v1057 = vmul.f32 %v1056, 0.6931472
        %v1058 = vlog2.pop %v787
        %v1059 = vmul.f32 %v1058, 0.6931472
        %v1060 = vsub.f32 %v1012, %v1029
        %v1061 = vsub.f32 %v1013, %v1031
        %v1062 = vsub.f32 %v1014, %v1033
        %v1063 = vsub.f32 %v1015, %v1035
        %v1064 = vsub.f32 %v1016, %v1037
        %v1065 = vsub.f32 %v1017, %v1039
        %v1066 = vsub.f32 %v1018, %v1041
        %v1067 = vsub.f32 %v1019, %v1043
        %v1068 = vsub.f32 %v1020, %v1045
        %v1069 = vsub.f32 %v1021, %v1047
        %v1070 = vsub.f32 %v1022, %v1049
        %v1071 = vsub.f32 %v1023, %v1051
        %v1072 = vsub.f32 %v1024, %v1053
        %v1073 = vsub.f32 %v1025, %v1055
        %v1074 = vsub.f32 %v1026, %v1057
        %v1075 = vsub.f32 %v1027, %v1059
        %v1076 = vadd.f32 %v1060, %v1061
        %v1077 = vadd.f32 %v1076, %v1062
        %v1078 = vadd.f32 %v1077, %v1063
        %v1079 = vadd.f32 %v1078, %v1064
        %v1080 = vadd.f32 %v1079, %v1065
        %v1081 = vadd.f32 %v1080, %v1066
        %v1082 = vadd.f32 %v1081, %v1067
        %v1083 = vadd.f32 %v1082, %v1068
        %v1084 = vadd.f32 %v1083, %v1069
        %v1085 = vadd.f32 %v1084, %v1070
        %v1086 = vadd.f32 %v1085, %v1071
        %v1087 = vadd.f32 %v1086, %v1072
        %v1088 = vadd.f32 %v1087, %v1073
        %v1089 = vadd.f32 %v1088, %v1074
        %v1090 = vadd.f32 %v1089, %v1075
        %1091 = vadd.xlane.f32.xlu0 %v1090
        %v1092 = vpop.xlane.xlu0 %1091
        %v1093 = vrot.slane %v1092, 4
        %v1094 = vadd.f32 %v1092, %v1093
        %v1095 = vrot.slane %v1094, 2
        %v1096 = vadd.f32 %v1094, %v1095
        %v1097 = vrot.slane %v1096, 1
        %v1098 = vadd.f32 %v1096, %v1097
        %s1099 = vtos %v1098
        // Predicated region
        $region69: #{tpu_custom_call.1} parent=47 // pred_check
          %p1100 = pneg %p869
        $region70: #{tpu_custom_call.1} parent=47 // pred_check_branch
          %1102 = sbr.rel (%p1100) target = $region72
        $region71: #{tpu_custom_call.1} parent=47 // pred_region
          %v1103 = vld [vmem:[%s506] sm:$0x1]
          %v1104 = vmul.f32 %v868, %v868
          %v1105 = vmul.f32 %v1103, %v1103
          %v1106 = vadd.f32 %v1104, %v1105
          %v1107 = vmul.f32 %v1106, 50.0
          %v1108 = vlog2.pop %v868
          %v1109 = vmul.f32 %v1108, 0.6931472
          %v1110 = vsub.f32 %v1107, %v1109
          %vm1111 = vcmask 1040384
          %v1112 = vsel %vm1111, %v1110, 0.0
          %1113 = vadd.xlane.f32.xlu0 %v1112
          %v1114 = vpop.xlane.xlu0 %1113
          %v1115 = vrot.slane %v1114, 4
          %v1116 = vadd.f32 %v1114, %v1115
          %v1117 = vrot.slane %v1116, 2
          %v1118 = vadd.f32 %v1116, %v1117
          %v1119 = vrot.slane %v1118, 1
          %v1120 = vadd.f32 %v1118, %v1119
          %s1121 = vtos %v1120
          %v1122 = vstv %s1121
          %vm1123 = vcmask 0
          %1124 = vst.msk [vmem:[%s515] sm:$0x1] %vm1123, %v1122
        $region72: #{tpu_custom_call.1} parent=47 // pred_fallthru
          _
        %v1125 = vld [vmem:[%s515] sm:$0x1]
        %v1126 = vstv %s1099
        %v1127 = vadd.f32 %v1125, %v1126
        %vm1128 = vcmask 0
        %1129 = vst.msk [vmem:[%s515] sm:$0x1] %vm1128, %v1127
        %p1130 = scmp.eq.s32.totalorder %s37, 1
        // Predicated region
        $region73: #{tpu_custom_call.1} parent=47 // pred_check
          %p1131 = pneg %p1130
        $region74: #{tpu_custom_call.1} parent=47 // pred_check_branch
          %1133 = sbr.rel (%p1131) target = $region76
        $region75: #{tpu_custom_call.1} parent=47 // pred_region
          %v1134 = vld [vmem:[%s506] sm:$0x1]
          %v1135 = vld [vmem:[%s512] sm:$0x1]
          %v1136 = vmul.f32 %v1135, %v868
          %v1137 = vadd.f32 %v1134, %v1136
          %v1138 = vld [vmem:[#allocation2] sm:$0xff]
          %v1140 = vlaneseq
          %v1141 = vshrl.u32 %v1140, 7
          %v1142 = vsub.s32 0, %v1141
          %v1143 = vrot.slane %v1137, %v1142
          %v1145 = vadd.f32 %v1138, %v1143
          %1146 = vst [vmem:[%s495] sm:$0xff] %v1145
        $region76: #{tpu_custom_call.1} parent=47 // pred_fallthru
          _
        %s1147 = sand.u32 %s240, 1
        %s1148 = scalar_lea.sflag [#allocation5], %s1147
        %s1149 = sand.u32 %s240, 1
        %s1150 = smul.addr %s1149, 8
        %s1151 = scalar_lea.vmem [#allocation11], %s1150
        %p1152 = scmp.lt.s32.totalorder %s36, 1
        %s1153 = scalar_select %p1152, %s36, 1
        %s1154 = scalar_lea.vmem %s8, %s1153
        // Predicated region
        $region77: #{tpu_custom_call.1} parent=47 // pred_check
          %p1155 = pneg %p250
        $region78: #{tpu_custom_call.1} parent=47 // pred_check_branch
          %1157 = sbr.rel (%p1155) target = $region80
        $region79: #{tpu_custom_call.1} parent=47 // pred_region
          %s1159 = ssub.s32 128, 128
          %1160 = vsyncadd %s1148, %s1159
          %s1161 = smul.addr %s36, 128
          %s1162 = scalar_lea.hbm %s7, %s1161
          %s1164 = sshll.u32 %s1151, 4
          %s1165 = int_to_ptr.vmem [resolvable:$true] %s1164
          %1167 = dma.vmem_to_hbm [thread:$0]  %s1165, 128, %s1162, %s1148
        $region80: #{tpu_custom_call.1} parent=47 // pred_fallthru
          _
        // Predicated region
        $region81: #{tpu_custom_call.1} parent=47 // pred_check
          %p1168 = pneg %p276
        $region82: #{tpu_custom_call.1} parent=47 // pred_check_branch
          %1170 = sbr.rel (%p1168) target = $region84
        $region83: #{tpu_custom_call.1} parent=47 // pred_region
          _
        $region84: #{tpu_custom_call.1} parent=47 // pred_fallthru
          _
      $region48: #{tpu_custom_call.1} parent=5 // pred_fallthru
        _
      %p1171 = scmp.le.s32.totalorder 2, %s27
      // Predicated region
      $region85: #{tpu_custom_call.1} parent=5 // pred_check
        %p1172 = pneg %p1171
      $region86: #{tpu_custom_call.1} parent=5 // pred_check_branch
        %1174 = sbr.rel (%p1172) target = $region88
      $region87: #{tpu_custom_call.1} parent=5 // pred_region
        %s1175 = ssub.s32 %s27, 2
        // Predicated region
        $region89: #{tpu_custom_call.1} parent=87 // pred_check
          %p1176 = pneg %p256
        $region90: #{tpu_custom_call.1} parent=87 // pred_check_branch
          %1178 = sbr.rel (%p1176) target = $region92
        $region91: #{tpu_custom_call.1} parent=87 // pred_region
          %s1179 = sand.u32 %s241, 1
          %s1180 = scalar_lea.sflag [#allocation5], %s1179
          %s1181 = sand.u32 %s241, 1
          %s1182 = smul.addr %s1181, 8
          %s1183 = scalar_lea.vmem [#allocation11], %s1182
          %1184 = dma.done %s1180, 128
        $region92: #{tpu_custom_call.1} parent=87 // pred_fallthru
          _
        // Predicated region
        $region93: #{tpu_custom_call.1} parent=87 // pred_check
          %p1185 = pneg %p282
        $region94: #{tpu_custom_call.1} parent=87 // pred_check_branch
          %1187 = sbr.rel (%p1185) target = $region96
        $region95: #{tpu_custom_call.1} parent=87 // pred_region
          %p1188 = scmp.lt.s32.totalorder %s38, 1
          %s1189 = scalar_select %p1188, %s38, 1
          %s1190 = scalar_lea.vmem %s8, %s1189
        $region96: #{tpu_custom_call.1} parent=87 // pred_fallthru
          _
      $region88: #{tpu_custom_call.1} parent=5 // pred_fallthru
        _
    $region6: #{tpu_custom_call.1} parent=1 // loop_footer
      %s31 = sadd.s32 1, %s27
    $region7: #{tpu_custom_call.1} parent=1 // loop_footer_branch
      %26 = sbr.rel target = $region3
    $region8: #{tpu_custom_call.1} parent=1 // loop_exit
      _
    %1191 = vsyncpa [#allocation4], 1
    %s1192 = scalar_lea.sflag [#allocation4], 1
    %1193 = vsyncpa %s1192, 1
    %1194 = vsyncpa [#allocation7], 1
    %s1195 = scalar_lea.sflag [#allocation7], 1
    %1196 = vsyncpa %s1195, 1
    %1197 = vsyncpa [#allocation10], 1
    %s1198 = scalar_lea.sflag [#allocation10], 1
    %1199 = vsyncpa %s1198, 1
    %1200 = vsyncpa [#allocation5], 1
    %s1201 = scalar_lea.sflag [#allocation5], 1
    %1202 = vsyncpa %s1201, 1

</llo_original>
